<compile_context>
chip_gen: v7x
topology: tpu7x:2x2x1
jax: 0.10.0
libtpu: 0.0.40
codegen_flags: <defaults>
</compile_context>

<pallas_src>
import functools

import jax
import jax.numpy as jnp
from jax.experimental import pallas as pl
from jax.experimental.pallas import tpu as pltpu


def ml1_kernel(u_ref, v_ref, w_ref, g_ref, o_ref, *, bf16_eup):
    # u_ref: (tb, d1) f32   v_ref: (tb, d2) f32   w_ref: (tb, d3) f32
    # g_ref: (d1, d2*d3) bf16   o_ref: (1, 1, tb) f32  (batch on lane axis)
    d2 = v_ref.shape[1]
    d3 = w_ref.shape[1]

    v = v_ref[...]                                        # (tb, d2) f32

    # One fused MXU push: (tb, d1) @ (d1, d2*d3) -> (tb, d2*d3), f32 acc.
    # bf16 operands are the native MXU dtype (G already bf16 in HBM; u is
    # cast in-regs -- its HBM traffic is negligible).
    u = u_ref[...].astype(jnp.bfloat16)
    x = jnp.dot(u, g_ref[...], preferred_element_type=jnp.float32)

    # Inner sigmoid over the whole (tb, d2*d3) slab:
    #   sigmoid(x) = 0.5 * tanh(0.5 * x) + 0.5   -> single EUP op / element.
    # Optional bf16 tanh (v6e/v7x EUP runs bf16 at ~2x f32); 0.5 scale and
    # the downstream FMAs / accumulator stay in f32.
    if bf16_eup:
        t = jnp.tanh((x * 0.5).astype(jnp.bfloat16)).astype(jnp.float32)
    else:
        t = jnp.tanh(x * 0.5)
    p = 0.5 * t + 0.5                                     # (tb, d2*d3) f32

    # gv[b, k] = sum_j v[b, j] * p[b, j*d3 + k]
    # Unrolled d2 loop over 128-lane-aligned column slices of p: no relayout,
    # no cross-lane broadcast -- pure VPU FMAs (VPU has large slack).
    gv = v[:, 0:1] * p[:, 0:d3]
    for j in range(1, d2):
        gv = gv + v[:, j:j + 1] * p[:, j * d3:(j + 1) * d3]

    # Outer sigmoid, same tanh form (only tb*d3 wide), f32.
    gv = 0.5 * jnp.tanh(0.5 * gv) + 0.5

    # pred[b] = sum_k w[b, k] * gv[b, k]  -> lane-dense (1, tb) row store.
    # (The (tb,)->(1,tb) relayout rides the XLU slot; if a bundle dump ever
    #  shows it scalarized, fall back to a (tb,1) column store per tile.)
    pred = jnp.sum(w_ref[...] * gv, axis=1)               # (tb,)
    o_ref[0, 0, :] = pred


def _round_up(x, m):
    return ((x + m - 1) // m) * m


def _bf16_eup_supported():
    # v6e / v7x EUP supports bf16 transcendentals; v5e (and older) does not.
    try:
        kind = jax.devices()[0].device_kind.lower()
    except Exception:
        return False
    return ("v6" in kind) or ("v7" in kind)


def ml1_forward(u, v, w, G, *, tb=None, bf16_eup=None):
    """u:(B,d1) v:(B,d2) w:(B,d3) G:(d1,d2,d3) -> pred:(B,)"""
    B, d1 = u.shape
    d2 = v.shape[1]
    d3 = w.shape[1]
    if bf16_eup is None:
        bf16_eup = _bf16_eup_supported()

    u = u.astype(jnp.float32)
    v = v.astype(jnp.float32)
    w = w.astype(jnp.float32)
    # bf16 core tensor in HBM: native MXU dtype, halves G HBM/VMEM traffic.
    g_flat = G.reshape(d1, d2 * d3).astype(jnp.bfloat16)

    # Tile selection:
    #  * at least 2 grid steps whenever B > 8 so the "parallel" grid axis can
    #    shard across v7x's two TensorCores (irrelevant on v5e/v6e, harmless);
    #  * 1024-row tiles for large B to amortize the ~0.35us/step pipeline
    #    overhead -- per-tile VMEM (inputs double-buffered + a (tb,d2*d3) f32
    #    intermediate) is only a few MiB, far under VMEM on v5e/v6e/v7x.
    if tb is None:
        if B <= 2048:
            tb = max(8, _round_up(pl.cdiv(B, 2), 8))
        else:
            tb = 1024
    grid = pl.cdiv(B, tb)
    Bp = grid * tb

    if Bp != B:
        pad = Bp - B
        # Zero padding is benign: padded rows give pred == 0 and are sliced off.
        u = jnp.pad(u, ((0, pad), (0, 0)))
        v = jnp.pad(v, ((0, pad), (0, 0)))
        w = jnp.pad(w, ((0, pad), (0, 0)))

    kernel = functools.partial(ml1_kernel, bf16_eup=bf16_eup)

    # TODO(synk): optionally fuse the embedding gathers (tiny U/V/W tables as
    # VMEM inputs + int32 indices via scalar prefetch, jnp.take in-kernel) to
    # remove one HBM round trip; kept as plain-JAX glue here.
    out = pl.pallas_call(
        kernel,
        out_shape=jax.ShapeDtypeStruct((grid, 1, tb), jnp.float32),
        grid_spec=pltpu.PrefetchScalarGridSpec(
            num_scalar_prefetch=0,
            grid=(grid,),
            in_specs=[
                pl.BlockSpec((tb, d1), lambda i: (i, 0)),
                pl.BlockSpec((tb, d2), lambda i: (i, 0)),
                pl.BlockSpec((tb, d3), lambda i: (i, 0)),
                pl.BlockSpec((d1, d2 * d3), lambda i: (0, 0)),
            ],
            out_specs=pl.BlockSpec((1, 1, tb), lambda i: (i, 0, 0)),
        ),
        compiler_params=pltpu.CompilerParams(
            dimension_semantics=("parallel",),
        ),
    )(u, v, w, g_flat)
    return out.reshape(Bp)[:B]          # torch.squeeze equivalent (+ drop pad)


def ml1_reference(u, v, w, G):
    d1, d2, d3 = G.shape
    x = jax.nn.sigmoid(u @ G.reshape(d1, d2 * d3)).reshape(-1, d2, d3)
    gv = jax.nn.sigmoid(jnp.einsum("bj,bjk->bk", v, x))
    return jnp.einsum("bk,bk->b", w, gv)


if __name__ == "__main__":
    # module config: shape = vocab sizes, rank = (d1, d2, d3)
    shape = (64, 64, 64)
    rank = (16, 8, 128)
    d1, d2, d3 = rank
    B = 16

    key = jax.random.PRNGKey(0)
    kU, kV, kW, kG, ku, kv, kw = jax.random.split(key, 7)

    # Deterministic "xavier-normal-ish" embedding tables; padding_idx=0 row zeroed.
    def make_emb(k, n, d):
        std = (2.0 / (n + d)) ** 0.5
        t = std * jax.random.normal(k, (n, d), dtype=jnp.float32)
        return t.at[0].set(0.0)  # padding_idx = 0

    U_tab = make_emb(kU, shape[0], d1)
    V_tab = make_emb(kV, shape[1], d2)
    W_tab = make_emb(kW, shape[2], d3)
    # core tensor G ~ Uniform(-1, 1)
    G = jax.random.uniform(kG, (d1, d2, d3), minval=-1.0, maxval=1.0,
                           dtype=jnp.float32)

    # index inputs
    u_idx = jax.random.randint(ku, (B,), 0, shape[0])
    v_idx = jax.random.randint(kv, (B,), 0, shape[1])
    w_idx = jax.random.randint(kw, (B,), 0, shape[2])

    # embedding gathers are glue; done in plain JAX
    u = U_tab[u_idx]
    v = V_tab[v_idx]
    w = W_tab[w_idx]

    pred = jax.block_until_ready(ml1_forward(u, v, w, G))
    ref = ml1_reference(u, v, w, G)
    assert pred.shape == (B,)
    # Tolerance covers bf16 MXU operands (+ optional bf16 tanh on v6e/v7x);
    # the tanh-form sigmoid itself is exact, so this is tighter than before.
    assert jnp.allclose(pred, ref, atol=5e-3, rtol=5e-3), (pred, ref)
    print("KERNEL_OK")
</pallas_src>

<mosaic_0001>
module attributes {stable_mosaic.version = 11 : i64} {
  func.func @ml1_kernel(%arg0: i32, %arg1: memref<8x16xf32, #tpu.memory_space<vmem>>, %arg2: memref<8x8xf32, #tpu.memory_space<vmem>>, %arg3: memref<8x128xf32, #tpu.memory_space<vmem>>, %arg4: memref<16x1024xbf16, #tpu.memory_space<vmem>>, %arg5: memref<1x1x8xf32, #tpu.memory_space<vmem>>) attributes {dimension_semantics = [#tpu.dimension_semantics<parallel>], iteration_bounds = array<i64: 2>, scalar_prefetch = 0 : i64, scratch_operands = 0 : i64, tpu.core_type = #tpu.core_type<tc>, window_params = [{transform_indices = @transform_0, window_bounds = array<i64: 8, 16>}, {transform_indices = @transform_1, window_bounds = array<i64: 8, 8>}, {transform_indices = @transform_2, window_bounds = array<i64: 8, 128>}, {pipeline_mode = #tpu.pipeline_mode<synchronous>, transform_indices = @transform_3, window_bounds = array<i64: 16, 1024>}, {transform_indices = @transform_4, window_bounds = array<i64: 1, 1, 8>}]} {
    %c0 = arith.constant 0 : index
    %c0_0 = arith.constant 0 : index
    %0 = vector.load %arg2[%c0, %c0_0] : memref<8x8xf32, #tpu.memory_space<vmem>>, vector<8x8xf32>
    %c0_1 = arith.constant 0 : index
    %c0_2 = arith.constant 0 : index
    %1 = vector.load %arg1[%c0_1, %c0_2] : memref<8x16xf32, #tpu.memory_space<vmem>>, vector<8x16xf32>
    %2 = arith.truncf %1 : vector<8x16xf32> to vector<8x16xbf16>
    %c0_3 = arith.constant 0 : index
    %c0_4 = arith.constant 0 : index
    %3 = vector.load %arg4[%c0_3, %c0_4] : memref<16x1024xbf16, #tpu.memory_space<vmem>>, vector<16x1024xbf16>
    %cst = arith.constant dense<0.000000e+00> : vector<8x1024xf32>
    %4 = tpu.matmul %2, %3, %cst {dimension_numbers = #tpu.dot_dimension_numbers<[1], [0], [0], [1], [0, 0, 1, 1], [], []>} : vector<8x16xbf16>, vector<16x1024xbf16>, vector<8x1024xf32> -> vector<8x1024xf32>
    %cst_5 = arith.constant 5.000000e-01 : f32
    %5 = vector.broadcast %cst_5 : f32 to vector<8x1024xf32>
    %6 = arith.mulf %4, %5 : vector<8x1024xf32>
    %7 = math.tanh %6 : vector<8x1024xf32>
    %cst_6 = arith.constant 5.000000e-01 : f32
    %8 = vector.broadcast %cst_6 : f32 to vector<8x1024xf32>
    %9 = arith.mulf %8, %7 : vector<8x1024xf32>
    %cst_7 = arith.constant 5.000000e-01 : f32
    %10 = vector.broadcast %cst_7 : f32 to vector<8x1024xf32>
    %11 = arith.addf %9, %10 : vector<8x1024xf32>
    %12 = vector.extract_strided_slice %0 {offsets = [0, 0], sizes = [8, 1], strides = [1, 1]} : vector<8x8xf32> to vector<8x1xf32>
    %13 = vector.extract_strided_slice %11 {offsets = [0, 0], sizes = [8, 128], strides = [1, 1]} : vector<8x1024xf32> to vector<8x128xf32>
    %14 = vector.broadcast %12 : vector<8x1xf32> to vector<8x128xf32>
    %15 = arith.mulf %14, %13 : vector<8x128xf32>
    %16 = vector.extract_strided_slice %0 {offsets = [0, 1], sizes = [8, 1], strides = [1, 1]} : vector<8x8xf32> to vector<8x1xf32>
    %17 = vector.extract_strided_slice %11 {offsets = [0, 128], sizes = [8, 128], strides = [1, 1]} : vector<8x1024xf32> to vector<8x128xf32>
    %18 = vector.broadcast %16 : vector<8x1xf32> to vector<8x128xf32>
    %19 = arith.mulf %18, %17 : vector<8x128xf32>
    %20 = arith.addf %15, %19 : vector<8x128xf32>
    %21 = vector.extract_strided_slice %0 {offsets = [0, 2], sizes = [8, 1], strides = [1, 1]} : vector<8x8xf32> to vector<8x1xf32>
    %22 = vector.extract_strided_slice %11 {offsets = [0, 256], sizes = [8, 128], strides = [1, 1]} : vector<8x1024xf32> to vector<8x128xf32>
    %23 = vector.broadcast %21 : vector<8x1xf32> to vector<8x128xf32>
    %24 = arith.mulf %23, %22 : vector<8x128xf32>
    %25 = arith.addf %20, %24 : vector<8x128xf32>
    %26 = vector.extract_strided_slice %0 {offsets = [0, 3], sizes = [8, 1], strides = [1, 1]} : vector<8x8xf32> to vector<8x1xf32>
    %27 = vector.extract_strided_slice %11 {offsets = [0, 384], sizes = [8, 128], strides = [1, 1]} : vector<8x1024xf32> to vector<8x128xf32>
    %28 = vector.broadcast %26 : vector<8x1xf32> to vector<8x128xf32>
    %29 = arith.mulf %28, %27 : vector<8x128xf32>
    %30 = arith.addf %25, %29 : vector<8x128xf32>
    %31 = vector.extract_strided_slice %0 {offsets = [0, 4], sizes = [8, 1], strides = [1, 1]} : vector<8x8xf32> to vector<8x1xf32>
    %32 = vector.extract_strided_slice %11 {offsets = [0, 512], sizes = [8, 128], strides = [1, 1]} : vector<8x1024xf32> to vector<8x128xf32>
    %33 = vector.broadcast %31 : vector<8x1xf32> to vector<8x128xf32>
    %34 = arith.mulf %33, %32 : vector<8x128xf32>
    %35 = arith.addf %30, %34 : vector<8x128xf32>
    %36 = vector.extract_strided_slice %0 {offsets = [0, 5], sizes = [8, 1], strides = [1, 1]} : vector<8x8xf32> to vector<8x1xf32>
    %37 = vector.extract_strided_slice %11 {offsets = [0, 640], sizes = [8, 128], strides = [1, 1]} : vector<8x1024xf32> to vector<8x128xf32>
    %38 = vector.broadcast %36 : vector<8x1xf32> to vector<8x128xf32>
    %39 = arith.mulf %38, %37 : vector<8x128xf32>
    %40 = arith.addf %35, %39 : vector<8x128xf32>
    %41 = vector.extract_strided_slice %0 {offsets = [0, 6], sizes = [8, 1], strides = [1, 1]} : vector<8x8xf32> to vector<8x1xf32>
    %42 = vector.extract_strided_slice %11 {offsets = [0, 768], sizes = [8, 128], strides = [1, 1]} : vector<8x1024xf32> to vector<8x128xf32>
    %43 = vector.broadcast %41 : vector<8x1xf32> to vector<8x128xf32>
    %44 = arith.mulf %43, %42 : vector<8x128xf32>
    %45 = arith.addf %40, %44 : vector<8x128xf32>
    %46 = vector.extract_strided_slice %0 {offsets = [0, 7], sizes = [8, 1], strides = [1, 1]} : vector<8x8xf32> to vector<8x1xf32>
    %47 = vector.extract_strided_slice %11 {offsets = [0, 896], sizes = [8, 128], strides = [1, 1]} : vector<8x1024xf32> to vector<8x128xf32>
    %48 = vector.broadcast %46 : vector<8x1xf32> to vector<8x128xf32>
    %49 = arith.mulf %48, %47 : vector<8x128xf32>
    %50 = arith.addf %45, %49 : vector<8x128xf32>
    %cst_8 = arith.constant 5.000000e-01 : f32
    %51 = vector.broadcast %cst_8 : f32 to vector<8x128xf32>
    %52 = arith.mulf %51, %50 : vector<8x128xf32>
    %53 = math.tanh %52 : vector<8x128xf32>
    %cst_9 = arith.constant 5.000000e-01 : f32
    %54 = vector.broadcast %cst_9 : f32 to vector<8x128xf32>
    %55 = arith.mulf %54, %53 : vector<8x128xf32>
    %cst_10 = arith.constant 5.000000e-01 : f32
    %56 = vector.broadcast %cst_10 : f32 to vector<8x128xf32>
    %57 = arith.addf %55, %56 : vector<8x128xf32>
    %c0_11 = arith.constant 0 : index
    %c0_12 = arith.constant 0 : index
    %58 = vector.load %arg3[%c0_11, %c0_12] : memref<8x128xf32, #tpu.memory_space<vmem>>, vector<8x128xf32>
    %59 = arith.mulf %58, %57 : vector<8x128xf32>
    %cst_13 = arith.constant dense<0.000000e+00> : vector<8xf32>
    %60 = vector.multi_reduction <add>, %59, %cst_13 [1] : vector<8x128xf32> to vector<8xf32>
    %c0_14 = arith.constant 0 : index
    %c0_15 = arith.constant 0 : index
    %c0_16 = arith.constant 0 : index
    %61 = vector.load %arg5[%c0_14, %c0_15, %c0_16] : memref<1x1x8xf32, #tpu.memory_space<vmem>>, vector<1x1x8xf32>
    %62 = vector.shape_cast %61 : vector<1x1x8xf32> to vector<8xf32>
    %63 = vector.shape_cast %60 : vector<8xf32> to vector<1x1x8xf32>
    tpu.vector_store %arg5[%c0_14, %c0_15, %c0_16], %63 {strides = array<i32>} : memref<1x1x8xf32, #tpu.memory_space<vmem>>, vector<1x1x8xf32>,
    return
  }
  func.func @transform_0(%arg0: i32) -> (i32, i32) {
    %c0_i32 = arith.constant 0 : i32
    %c0_i32_0 = arith.constant 0 : i32
    return %arg0, %c0_i32 : i32, i32
  }
  func.func @transform_1(%arg0: i32) -> (i32, i32) {
    %c0_i32 = arith.constant 0 : i32
    %c0_i32_0 = arith.constant 0 : i32
    return %arg0, %c0_i32 : i32, i32
  }
  func.func @transform_2(%arg0: i32) -> (i32, i32) {
    %c0_i32 = arith.constant 0 : i32
    %c0_i32_0 = arith.constant 0 : i32
    return %arg0, %c0_i32 : i32, i32
  }
  func.func @transform_3(%arg0: i32) -> (i32, i32) {
    %c0_i32 = arith.constant 0 : i32
    %c0_i32_0 = arith.constant 0 : i32
    %c0_i32_1 = arith.constant 0 : i32
    return %c0_i32, %c0_i32_0 : i32, i32
  }
  func.func @transform_4(%arg0: i32) -> (i32, i32, i32) {
    %c0_i32 = arith.constant 0 : i32
    %c0_i32_0 = arith.constant 0 : i32
    %c0_i32_1 = arith.constant 0 : i32
    return %arg0, %c0_i32, %c0_i32_0 : i32, i32, i32
  }
}

</mosaic_0001>

<llo_original>
// kernel: tpu_custom_call.1
$region0: #{tpu_custom_call.1}
  #allocation0 [shape = 'u32[]', space=smem, size = 0x4, offset = 0x4, fixed_abs, tag = 'smem constant byte address 0x4 - core index']
  #allocation1 [shape = 'u32[144,128]{1,0:T(1,128)}', space=vmem, size = 0x12000, scoped, tag = 'internal scratch']
  %s0 = inlined_call_operand.vmem [shape: f32[16,16], index: 0, kind: input, shape index: {}]
  %s1 = inlined_call_operand.vmem [shape: f32[16,8], index: 1, kind: input, shape index: {}]
  %s2 = inlined_call_operand.hbm [shape: f32[16,128], index: 2, kind: input, shape index: {}]
  %s3 = inlined_call_operand.hbm [shape: bf16[16,1024], index: 3, kind: input, shape index: {}]
  %s4 = inlined_call_operand.hbm [shape: f32[2,1,8], index: 4, kind: output, shape index: {}]
  %s5 = sld [smem:[#allocation0]]
  $region57: #{tpu_custom_call.1} parent=0
    _
  %s7 = ssub.s32 1, %s5
  %s8 = scalar_select 0, %s7, %s5
  $region1: #{tpu_custom_call.1} parent=0
    #allocation2 [shape = 'u8[8192]{0}', space=vmem, size = 0x2000, scoped, tag = 'input window, operand 2']
    #allocation3 [shape = 's32[2]{0}', space=sflag, size = 0x8, scoped, tag = 'scoped memory for tpu_custom_call.1']
    #allocation4 [shape = 's32[2]{0}', space=sflag, size = 0x8, scoped, tag = 'scoped memory for tpu_custom_call.1']
    #allocation5 [shape = 'u8[32768]{0}', space=vmem, size = 0x8000, scoped, tag = 'input window, operand 3, single buffered']
    #allocation6 [shape = 's32[1]{0}', space=sflag, size = 0x4, scoped, tag = 'scoped memory for tpu_custom_call.1']
    #allocation7 [shape = 'u8[1024]{0}', space=vmem, size = 0x400, scoped, tag = 'output window, operand 0']
    %9 = vsyncpa [#allocation3], 0
    %s10 = scalar_lea.sflag [#allocation3], 1
    %11 = vsyncpa %s10, 0
    %12 = vsyncpa [#allocation6], 0
    %13 = vsyncpa [#allocation4], 0
    %s14 = scalar_lea.sflag [#allocation4], 1
    %15 = vsyncpa %s14, 0
    loop: start=0, step=1, limit=4
    $region2: #{tpu_custom_call.1} parent=1 // loop_pre_header
      _
    $region3: #{tpu_custom_call.1} parent=1 // loop_header
      %s17 = sphi 0, %s21
      %p18 = scmp.ge.s32.totalorder %s17, 4
      %s27 = sphi 0, %s29
      %s30 = sphi 0, %s27
      %s31 = sphi 0, %s30
      %s47 = sphi 0, %s31
      %s53 = sphi 0, %s55
      %s56 = sphi 0, %s53
      %s57 = sphi 0, %s56
      %s73 = sphi 0, %s57
      %s79 = sphi 0, %s81
      %s82 = sphi 0, %s79
      %s83 = sphi 0, %s82
      %s99 = sphi 0, %s83
      %s103 = sphi 0, %s103
      %s105 = sphi 0, %s103
      %s106 = sphi 0, %s105
      %s120 = sphi 0, %s106
      %s126 = sphi 0, %s128
      %s129 = sphi 0, %s126
      %s130 = sphi 0, %s129
      %s146 = sphi 0, %s130
    $region4: #{tpu_custom_call.1} parent=1 // loop_header_branch
      %20 = sbr.rel (%p18) target = $region8
    $region5: #{tpu_custom_call.1} parent=1 // loop_body
      %s22 = ssub.s32 %s17, 1
      %s23 = ssub.s32 %s17, 2
      %s24 = sadd.s32 %s17, 1
      %s25 = ssub.s32 %s17, %s24
      %p26 = scmp.eq.s32.totalorder %s25, 0
      %s28 = sadd.s32 %s27, 1
      %s29 = scalar_select %p26, %s27, %s28
      %p32 = pneg %p26
      %p33 = scmp.eq.s32.totalorder %s17, 1
      %p34 = por %p32, %p33
      %p35 = scmp.ne.s32.totalorder %s27, %s30
      %p36 = scmp.eq.s32.totalorder %s17, 0
      %p37 = por %p35, %p36
      %p38 = scmp.ne.s32.totalorder %s27, %s30
      %p39 = scmp.eq.s32.totalorder %s22, 1
      %p40 = por %p38, %p39
      %p41 = scmp.ne.s32.totalorder %s30, %s31
      %p42 = scmp.eq.s32.totalorder %s22, 0
      %p43 = por %p41, %p42
      %p44 = scmp.ne.s32.totalorder %s30, %s31
      %p45 = scmp.eq.s32.totalorder %s23, 1
      %p46 = por %p44, %p45
      %p48 = scmp.ne.s32.totalorder %s31, %s47
      %p49 = scmp.eq.s32.totalorder %s23, 0
      %p50 = por %p48, %p49
      %s51 = ssub.s32 %s17, %s24
      %p52 = scmp.eq.s32.totalorder %s51, 0
      %s54 = sadd.s32 %s53, 1
      %s55 = scalar_select %p52, %s53, %s54
      %p58 = pneg %p52
      %p59 = scmp.eq.s32.totalorder %s17, 1
      %p60 = por %p58, %p59
      %p61 = scmp.ne.s32.totalorder %s53, %s56
      %p62 = scmp.eq.s32.totalorder %s17, 0
      %p63 = por %p61, %p62
      %p64 = scmp.ne.s32.totalorder %s53, %s56
      %p65 = scmp.eq.s32.totalorder %s22, 1
      %p66 = por %p64, %p65
      %p67 = scmp.ne.s32.totalorder %s56, %s57
      %p68 = scmp.eq.s32.totalorder %s22, 0
      %p69 = por %p67, %p68
      %p70 = scmp.ne.s32.totalorder %s56, %s57
      %p71 = scmp.eq.s32.totalorder %s23, 1
      %p72 = por %p70, %p71
      %p74 = scmp.ne.s32.totalorder %s57, %s73
      %p75 = scmp.eq.s32.totalorder %s23, 0
      %p76 = por %p74, %p75
      %s77 = ssub.s32 %s17, %s24
      %p78 = scmp.eq.s32.totalorder %s77, 0
      %s80 = sadd.s32 %s79, 1
      %s81 = scalar_select %p78, %s79, %s80
      %p84 = pneg %p78
      %p85 = scmp.eq.s32.totalorder %s17, 1
      %p86 = por %p84, %p85
      %p87 = scmp.ne.s32.totalorder %s79, %s82
      %p88 = scmp.eq.s32.totalorder %s17, 0
      %p89 = por %p87, %p88
      %p90 = scmp.ne.s32.totalorder %s79, %s82
      %p91 = scmp.eq.s32.totalorder %s22, 1
      %p92 = por %p90, %p91
      %p93 = scmp.ne.s32.totalorder %s82, %s83
      %p94 = scmp.eq.s32.totalorder %s22, 0
      %p95 = por %p93, %p94
      %p96 = scmp.ne.s32.totalorder %s82, %s83
      %p97 = scmp.eq.s32.totalorder %s23, 1
      %p98 = por %p96, %p97
      %p100 = scmp.ne.s32.totalorder %s83, %s99
      %p101 = scmp.eq.s32.totalorder %s23, 0
      %p102 = por %p100, %p101
      %s104 = sadd.s32 %s103, 1
      %p107 = scmp.eq.s32.totalorder %s17, 1
      %p108 = scmp.ne.s32.totalorder %s103, %s105
      %p109 = scmp.eq.s32.totalorder %s17, 0
      %p110 = por %p108, %p109
      %p111 = scmp.ne.s32.totalorder %s103, %s105
      %p112 = scmp.eq.s32.totalorder %s22, 1
      %p113 = por %p111, %p112
      %p114 = scmp.ne.s32.totalorder %s105, %s106
      %p115 = scmp.eq.s32.totalorder %s22, 0
      %p116 = por %p114, %p115
      %p117 = scmp.ne.s32.totalorder %s105, %s106
      %p118 = scmp.eq.s32.totalorder %s23, 1
      %p119 = por %p117, %p118
      %p121 = scmp.ne.s32.totalorder %s106, %s120
      %p122 = scmp.eq.s32.totalorder %s23, 0
      %p123 = por %p121, %p122
      %s124 = ssub.s32 %s17, %s24
      %p125 = scmp.eq.s32.totalorder %s124, 0
      %s127 = sadd.s32 %s126, 1
      %s128 = scalar_select %p125, %s126, %s127
      %p131 = pneg %p125
      %p132 = scmp.eq.s32.totalorder %s17, 1
      %p133 = por %p131, %p132
      %p134 = scmp.ne.s32.totalorder %s126, %s129
      %p135 = scmp.eq.s32.totalorder %s17, 0
      %p136 = por %p134, %p135
      %p137 = scmp.ne.s32.totalorder %s126, %s129
      %p138 = scmp.eq.s32.totalorder %s22, 1
      %p139 = por %p137, %p138
      %p140 = scmp.ne.s32.totalorder %s129, %s130
      %p141 = scmp.eq.s32.totalorder %s22, 0
      %p142 = por %p140, %p141
      %p143 = scmp.ne.s32.totalorder %s129, %s130
      %p144 = scmp.eq.s32.totalorder %s23, 1
      %p145 = por %p143, %p144
      %p147 = scmp.ne.s32.totalorder %s130, %s146
      %p148 = scmp.eq.s32.totalorder %s23, 0
      %p149 = por %p147, %p148
      %p150 = scmp.le.s32.totalorder 1, %s17
      %p151 = scmp.lt.s32.totalorder %s17, 3
      %p152 = pnand %p150, %p151
      %p153 = pneg %p152
      // Predicated region
      $region9: #{tpu_custom_call.1} parent=5 // pred_check
        _
      $region10: #{tpu_custom_call.1} parent=5 // pred_check_branch
        %155 = sbr.rel (%p152) target = $region12
      $region11: #{tpu_custom_call.1} parent=5 // pred_region
        %s156 = ssub.s32 %s17, 1
        // Predicated region
        $region13: #{tpu_custom_call.1} parent=11 // pred_check
          %p157 = pneg %p116
        $region14: #{tpu_custom_call.1} parent=11 // pred_check_branch
          %159 = sbr.rel (%p157) target = $region16
        $region15: #{tpu_custom_call.1} parent=11 // pred_region
          %s161 = ssub.s32 1024, 1024
          %162 = vsyncadd [#allocation6], %s161
          %s163 = sshll.u32 [#allocation5], 4
          %s164 = int_to_ptr.vmem [resolvable:$true] %s163
          %169 = dma.hbm_to_vmem [thread:$0]  %s3, 1024, %s164, [#allocation6], 512, 512, 32
        $region16: #{tpu_custom_call.1} parent=11 // pred_fallthru
          _
      $region12: #{tpu_custom_call.1} parent=5 // pred_fallthru
        _
      %p170 = scmp.lt.s32.totalorder %s17, 2
      // Predicated region
      $region17: #{tpu_custom_call.1} parent=5 // pred_check
        %p171 = pneg %p170
      $region18: #{tpu_custom_call.1} parent=5 // pred_check_branch
        %173 = sbr.rel (%p171) target = $region20
      $region19: #{tpu_custom_call.1} parent=5 // pred_region
        // Predicated region
        $region21: #{tpu_custom_call.1} parent=19 // pred_check
          %p174 = pneg %p37
        $region22: #{tpu_custom_call.1} parent=19 // pred_check_branch
          %176 = sbr.rel (%p174) target = $region24
        $region23: #{tpu_custom_call.1} parent=19 // pred_region
          %p177 = scmp.lt.s32.totalorder %s17, 1
          %s178 = scalar_select %p177, %s17, 1
          %s179 = smul.addr %s178, 8
          %s180 = scalar_lea.vmem %s0, %s179
        $region24: #{tpu_custom_call.1} parent=19 // pred_fallthru
          _
        // Predicated region
        $region25: #{tpu_custom_call.1} parent=19 // pred_check
          %p181 = pneg %p63
        $region26: #{tpu_custom_call.1} parent=19 // pred_check_branch
          %183 = sbr.rel (%p181) target = $region28
        $region27: #{tpu_custom_call.1} parent=19 // pred_region
          %p184 = scmp.lt.s32.totalorder %s17, 1
          %s185 = scalar_select %p184, %s17, 1
          %s186 = smul.addr %s185, 8
          %s187 = scalar_lea.vmem %s1, %s186
        $region28: #{tpu_custom_call.1} parent=19 // pred_fallthru
          _
        // Predicated region
        $region29: #{tpu_custom_call.1} parent=19 // pred_check
          %p188 = pneg %p89
        $region30: #{tpu_custom_call.1} parent=19 // pred_check_branch
          %190 = sbr.rel (%p188) target = $region32
        $region31: #{tpu_custom_call.1} parent=19 // pred_region
          %s191 = sand.u32 %s79, 1
          %s192 = scalar_lea.sflag [#allocation3], %s191
          %s193 = sand.u32 %s79, 1
          %s194 = smul.addr %s193, 8
          %s195 = scalar_lea.vmem [#allocation2], %s194
          %s197 = ssub.s32 128, 128
          %198 = vsyncadd %s192, %s197
          %s199 = smul.addr %s17, 128
          %s200 = scalar_lea.hbm %s2, %s199
          %s202 = sshll.u32 %s195, 4
          %s203 = int_to_ptr.vmem [resolvable:$true] %s202
          %205 = dma.hbm_to_vmem [thread:$0]  %s200, 128, %s203, %s192
        $region32: #{tpu_custom_call.1} parent=19 // pred_fallthru
          _
      $region20: #{tpu_custom_call.1} parent=5 // pred_fallthru
        _
      %p206 = scmp.le.s32.totalorder 1, %s17
      %p207 = scmp.lt.s32.totalorder %s17, 3
      %p208 = pnand %p206, %p207
      %p209 = pneg %p208
      // Predicated region
      $region33: #{tpu_custom_call.1} parent=5 // pred_check
        _
      $region34: #{tpu_custom_call.1} parent=5 // pred_check_branch
        %211 = sbr.rel (%p208) target = $region36
      $region35: #{tpu_custom_call.1} parent=5 // pred_region
        %s212 = ssub.s32 %s17, 1
        %s213 = sand.u32 %s82, 1
        %s214 = scalar_lea.sflag [#allocation3], %s213
        %s215 = sand.u32 %s82, 1
        %s216 = smul.addr %s215, 8
        %s217 = scalar_lea.vmem [#allocation2], %s216
        // Predicated region
        $region37: #{tpu_custom_call.1} parent=35 // pred_check
          %p218 = pneg %p95
        $region38: #{tpu_custom_call.1} parent=35 // pred_check_branch
          %220 = sbr.rel (%p218) target = $region40
        $region39: #{tpu_custom_call.1} parent=35 // pred_region
          %221 = dma.done %s214, 128
        $region40: #{tpu_custom_call.1} parent=35 // pred_fallthru
          _
        // Predicated region
        $region41: #{tpu_custom_call.1} parent=35 // pred_check
          %p222 = pneg %p116
        $region42: #{tpu_custom_call.1} parent=35 // pred_check_branch
          %224 = sbr.rel (%p222) target = $region44
        $region43: #{tpu_custom_call.1} parent=35 // pred_region
          %225 = dma.done [#allocation6], 1024
        $region44: #{tpu_custom_call.1} parent=35 // pred_fallthru
          _
        %p226 = scmp.lt.s32.totalorder %s22, 1
        %s227 = scalar_select %p226, %s22, 1
        %s228 = smul.addr %s227, 8
        %s229 = scalar_lea.vmem %s0, %s228
        %p230 = pneg %p43
        %p231 = pneg %p40
        %p232 = scmp.lt.s32.totalorder %s22, 1
        %s233 = scalar_select %p232, %s22, 1
        %s234 = smul.addr %s233, 8
        %s235 = scalar_lea.vmem %s1, %s234
        %p236 = pneg %p69
        %p237 = pneg %p66
        %s238 = sand.u32 %s82, 1
        %s239 = scalar_lea.sflag [#allocation3], %s238
        %s240 = sand.u32 %s82, 1
        %s241 = smul.addr %s240, 8
        %s242 = scalar_lea.vmem [#allocation2], %s241
        %p243 = pneg %p95
        %p244 = pneg %p92
        %p245 = pneg %p116
        %p246 = pneg %p113
        %p247 = pneg %p142
        %p248 = pneg %p139
        %s249 = sand.u32 %s129, 1
        %s250 = scalar_lea.sflag [#allocation4], %s249
        %s251 = sand.u32 %s129, 1
        %s252 = scalar_lea.vmem [#allocation7], %s251
        %p253 = scmp.lt.s32.totalorder %s22, 1
        %s254 = scalar_select %p253, %s22, 1
        %s255 = smul.addr %s254, 8
        %s256 = scalar_lea.vmem %s0, %s255
        %p257 = scmp.lt.s32.totalorder %s22, 1
        %s258 = scalar_select %p257, %s22, 1
        %s259 = smul.addr %s258, 8
        %s260 = scalar_lea.vmem %s1, %s259
        %v262 = vld [vmem:[%s260] sm:$0xff]
        %v263 = vld [vmem:[%s256] sm:$0xff]
        %v264 = vpack.c.bf16 %v263, %v263
        %v265 = vld [vmem:[#allocation5] sm:$0xff]
        %v266 = vld [vmem:[#allocation5 + $0x8] sm:$0xff]
        %v267 = vld [vmem:[#allocation5 + $0x10] sm:$0xff]
        %v268 = vld [vmem:[#allocation5 + $0x18] sm:$0xff]
        %v269 = vld [vmem:[#allocation5 + $0x20] sm:$0xff]
        %v270 = vld [vmem:[#allocation5 + $0x28] sm:$0xff]
        %v271 = vld [vmem:[#allocation5 + $0x30] sm:$0xff]
        %v272 = vld [vmem:[#allocation5 + $0x38] sm:$0xff]
        %v281 = vunpack.c.l.b16 %v265
        %v282 = vunpack.c.h.b16 %v265
        %v283 = vunpack.c.l.b16 %v266
        %v284 = vunpack.c.h.b16 %v266
        %v285 = vunpack.c.l.b16 %v267
        %v286 = vunpack.c.h.b16 %v267
        %v287 = vunpack.c.l.b16 %v268
        %v288 = vunpack.c.h.b16 %v268
        %v289 = vunpack.c.l.b16 %v269
        %v290 = vunpack.c.h.b16 %v269
        %v291 = vunpack.c.l.b16 %v270
        %v292 = vunpack.c.h.b16 %v270
        %v293 = vunpack.c.l.b16 %v271
        %v294 = vunpack.c.h.b16 %v271
        %v295 = vunpack.c.l.b16 %v272
        %v296 = vunpack.c.h.b16 %v272
        %v297 = vpack.c.b16 %v289, %v281
        %v298 = vpack.c.b16 %v290, %v282
        %v299 = vpack.c.b16 %v291, %v283
        %v300 = vpack.c.b16 %v292, %v284
        %v301 = vpack.c.b16 %v293, %v285
        %v302 = vpack.c.b16 %v294, %v286
        %v303 = vpack.c.b16 %v295, %v287
        %v304 = vpack.c.b16 %v296, %v288
        %vm313 = vcmask 130048
        %v315 = vsel %vm313, %v264, 0
        %317 = vmatprep.subr.bf16.mxu0 %v298
        %318 = vmatpush1.bf16.msra.mxu0 %v297
        %319 = vmatprep.subr.bf16.mxu0 0
        %320 = vmatpush1.bf16.msra.mxu0 0
        %321 = vmatprep.subr.bf16.mxu0 0
        %322 = vmatpush1.bf16.msra.mxu0 0
        %323 = vmatprep.subr.bf16.mxu0 0
        %324 = vmatpush1.bf16.msra.mxu0 0
        %325 = vmatprep.subr.bf16.mxu0 0
        %326 = vmatpush1.bf16.msra.mxu0 0
        %327 = vmatprep.subr.bf16.mxu0 0
        %328 = vmatpush1.bf16.msra.mxu0 0
        %329 = vmatprep.subr.bf16.mxu0 0
        %330 = vmatpush1.bf16.msra.mxu0 0
        %331 = vmatprep.subr.bf16.mxu0 0
        %332 = vmatpush1.bf16.msra.mxu0 0
        %333 = vmatprep.subr.bf16.mxu0 0
        %334 = vmatpush1.bf16.msra.mxu0 0
        %335 = vmatprep.subr.bf16.mxu0 0
        %336 = vmatpush1.bf16.msra.mxu0 0
        %337 = vmatprep.subr.bf16.mxu0 0
        %338 = vmatpush1.bf16.msra.mxu0 0
        %339 = vmatprep.subr.bf16.mxu0 0
        %340 = vmatpush1.bf16.msra.mxu0 0
        %341 = vmatprep.subr.bf16.mxu0 0
        %342 = vmatpush1.bf16.msra.mxu0 0
        %343 = vmatprep.subr.bf16.mxu0 0
        %344 = vmatpush1.bf16.msra.mxu0 0
        %345 = vmatprep.subr.bf16.mxu0 0
        %346 = vmatpush1.bf16.msra.mxu0 0
        %347 = vmatprep.subr.bf16.mxu0 0
        %348 = vmatpush1.bf16.msra.mxu0 0
        %349 = vmatprep.mubr.bf16.mxu0 0
        %350 = vmatmul.mubr.bf16.gmra.mrb[0].mxu0 %v315
        %v351 = vpop.f32.mrb[0].mxu0
        %v352 = vadd.f32 0.0, %v351
        %v353 = vpop.f32.mrb[0].mxu0
        %v354 = vadd.f32 0.0, %v353
        %v355 = vpop.f32.mrb[0].mxu0
        %v356 = vpop.f32.mrb[0].mxu0
        %357 = vdwg.mxu0
        %358 = vmatprep.subr.bf16.mxu0 %v300
        %359 = vmatpush1.bf16.msra.mxu0 %v299
        %360 = vmatprep.subr.bf16.mxu0 0
        %361 = vmatpush1.bf16.msra.mxu0 0
        %362 = vmatprep.subr.bf16.mxu0 0
        %363 = vmatpush1.bf16.msra.mxu0 0
        %364 = vmatprep.subr.bf16.mxu0 0
        %365 = vmatpush1.bf16.msra.mxu0 0
        %366 = vmatprep.subr.bf16.mxu0 0
        %367 = vmatpush1.bf16.msra.mxu0 0
        %368 = vmatprep.subr.bf16.mxu0 0
        %369 = vmatpush1.bf16.msra.mxu0 0
        %370 = vmatprep.subr.bf16.mxu0 0
        %371 = vmatpush1.bf16.msra.mxu0 0
        %372 = vmatprep.subr.bf16.mxu0 0
        %373 = vmatpush1.bf16.msra.mxu0 0
        %374 = vmatprep.subr.bf16.mxu0 0
        %375 = vmatpush1.bf16.msra.mxu0 0
        %376 = vmatprep.subr.bf16.mxu0 0
        %377 = vmatpush1.bf16.msra.mxu0 0
        %378 = vmatprep.subr.bf16.mxu0 0
        %379 = vmatpush1.bf16.msra.mxu0 0
        %380 = vmatprep.subr.bf16.mxu0 0
        %381 = vmatpush1.bf16.msra.mxu0 0
        %382 = vmatprep.subr.bf16.mxu0 0
        %383 = vmatpush1.bf16.msra.mxu0 0
        %384 = vmatprep.subr.bf16.mxu0 0
        %385 = vmatpush1.bf16.msra.mxu0 0
        %386 = vmatprep.subr.bf16.mxu0 0
        %387 = vmatpush1.bf16.msra.mxu0 0
        %388 = vmatprep.subr.bf16.mxu0 0
        %389 = vmatpush1.bf16.msra.mxu0 0
        %390 = vmatprep.mubr.bf16.mxu0 0
        %391 = vmatmul.mubr.bf16.gmra.mrb[0].mxu0 %v315
        %v392 = vpop.f32.mrb[0].mxu0
        %v393 = vadd.f32 0.0, %v392
        %v394 = vpop.f32.mrb[0].mxu0
        %v395 = vadd.f32 0.0, %v394
        %v396 = vpop.f32.mrb[0].mxu0
        %v397 = vpop.f32.mrb[0].mxu0
        %398 = vdwg.mxu0
        %399 = vmatprep.subr.bf16.mxu0 %v302
        %400 = vmatpush1.bf16.msra.mxu0 %v301
        %401 = vmatprep.subr.bf16.mxu0 0
        %402 = vmatpush1.bf16.msra.mxu0 0
        %403 = vmatprep.subr.bf16.mxu0 0
        %404 = vmatpush1.bf16.msra.mxu0 0
        %405 = vmatprep.subr.bf16.mxu0 0
        %406 = vmatpush1.bf16.msra.mxu0 0
        %407 = vmatprep.subr.bf16.mxu0 0
        %408 = vmatpush1.bf16.msra.mxu0 0
        %409 = vmatprep.subr.bf16.mxu0 0
        %410 = vmatpush1.bf16.msra.mxu0 0
        %411 = vmatprep.subr.bf16.mxu0 0
        %412 = vmatpush1.bf16.msra.mxu0 0
        %413 = vmatprep.subr.bf16.mxu0 0
        %414 = vmatpush1.bf16.msra.mxu0 0
        %415 = vmatprep.subr.bf16.mxu0 0
        %416 = vmatpush1.bf16.msra.mxu0 0
        %417 = vmatprep.subr.bf16.mxu0 0
        %418 = vmatpush1.bf16.msra.mxu0 0
        %419 = vmatprep.subr.bf16.mxu0 0
        %420 = vmatpush1.bf16.msra.mxu0 0
        %421 = vmatprep.subr.bf16.mxu0 0
        %422 = vmatpush1.bf16.msra.mxu0 0
        %423 = vmatprep.subr.bf16.mxu0 0
        %424 = vmatpush1.bf16.msra.mxu0 0
        %425 = vmatprep.subr.bf16.mxu0 0
        %426 = vmatpush1.bf16.msra.mxu0 0
        %427 = vmatprep.subr.bf16.mxu0 0
        %428 = vmatpush1.bf16.msra.mxu0 0
        %429 = vmatprep.subr.bf16.mxu0 0
        %430 = vmatpush1.bf16.msra.mxu0 0
        %431 = vmatprep.mubr.bf16.mxu0 0
        %432 = vmatmul.mubr.bf16.gmra.mrb[0].mxu0 %v315
        %v433 = vpop.f32.mrb[0].mxu0
        %v434 = vadd.f32 0.0, %v433
        %v435 = vpop.f32.mrb[0].mxu0
        %v436 = vadd.f32 0.0, %v435
        %v437 = vpop.f32.mrb[0].mxu0
        %v438 = vpop.f32.mrb[0].mxu0
        %439 = vdwg.mxu0
        %440 = vmatprep.subr.bf16.mxu0 %v304
        %441 = vmatpush1.bf16.msra.mxu0 %v303
        %442 = vmatprep.subr.bf16.mxu0 0
        %443 = vmatpush1.bf16.msra.mxu0 0
        %444 = vmatprep.subr.bf16.mxu0 0
        %445 = vmatpush1.bf16.msra.mxu0 0
        %446 = vmatprep.subr.bf16.mxu0 0
        %447 = vmatpush1.bf16.msra.mxu0 0
        %448 = vmatprep.subr.bf16.mxu0 0
        %449 = vmatpush1.bf16.msra.mxu0 0
        %450 = vmatprep.subr.bf16.mxu0 0
        %451 = vmatpush1.bf16.msra.mxu0 0
        %452 = vmatprep.subr.bf16.mxu0 0
        %453 = vmatpush1.bf16.msra.mxu0 0
        %454 = vmatprep.subr.bf16.mxu0 0
        %455 = vmatpush1.bf16.msra.mxu0 0
        %456 = vmatprep.subr.bf16.mxu0 0
        %457 = vmatpush1.bf16.msra.mxu0 0
        %458 = vmatprep.subr.bf16.mxu0 0
        %459 = vmatpush1.bf16.msra.mxu0 0
        %460 = vmatprep.subr.bf16.mxu0 0
        %461 = vmatpush1.bf16.msra.mxu0 0
        %462 = vmatprep.subr.bf16.mxu0 0
        %463 = vmatpush1.bf16.msra.mxu0 0
        %464 = vmatprep.subr.bf16.mxu0 0
        %465 = vmatpush1.bf16.msra.mxu0 0
        %466 = vmatprep.subr.bf16.mxu0 0
        %467 = vmatpush1.bf16.msra.mxu0 0
        %468 = vmatprep.subr.bf16.mxu0 0
        %469 = vmatpush1.bf16.msra.mxu0 0
        %470 = vmatprep.subr.bf16.mxu0 0
        %471 = vmatpush1.bf16.msra.mxu0 0
        %472 = vmatprep.mubr.bf16.mxu0 0
        %473 = vmatmul.mubr.bf16.gmra.mrb[0].mxu0 %v315
        %v474 = vpop.f32.mrb[0].mxu0
        %v475 = vadd.f32 0.0, %v474
        %v476 = vpop.f32.mrb[0].mxu0
        %v477 = vadd.f32 0.0, %v476
        %v478 = vpop.f32.mrb[0].mxu0
        %v479 = vpop.f32.mrb[0].mxu0
        %480 = vdwg.mxu0
        %v481 = vmul.f32 %v352, 0.5
        %v482 = vmul.f32 %v354, 0.5
        %v483 = vmul.f32 %v393, 0.5
        %v484 = vmul.f32 %v395, 0.5
        %v485 = vmul.f32 %v434, 0.5
        %v486 = vmul.f32 %v436, 0.5
        %v487 = vmul.f32 %v475, 0.5
        %v488 = vmul.f32 %v477, 0.5
        %v489 = vtanh.pop %v481
        %v490 = vtanh.pop %v482
        %v491 = vtanh.pop %v483
        %v492 = vtanh.pop %v484
        %v493 = vtanh.pop %v485
        %v494 = vtanh.pop %v486
        %v495 = vtanh.pop %v487
        %v496 = vtanh.pop %v488
        %v497 = vmul.f32 %v489, 0.5
        %v498 = vmul.f32 %v490, 0.5
        %v499 = vmul.f32 %v491, 0.5
        %v500 = vmul.f32 %v492, 0.5
        %v501 = vmul.f32 %v493, 0.5
        %v502 = vmul.f32 %v494, 0.5
        %v503 = vmul.f32 %v495, 0.5
        %v504 = vmul.f32 %v496, 0.5
        %v505 = vadd.f32 %v497, 0.5
        %v506 = vadd.f32 %v498, 0.5
        %v507 = vadd.f32 %v499, 0.5
        %v508 = vadd.f32 %v500, 0.5
        %v509 = vadd.f32 %v501, 0.5
        %v510 = vadd.f32 %v502, 0.5
        %v511 = vadd.f32 %v503, 0.5
        %v512 = vadd.f32 %v504, 0.5
        %514 = vset.pattern.permute.xlu0 0
        %515 = vperm.xlu0 %514, %v262
        %v516 = vpop.permute.xlu0 %515
        %v518 = vmul.f32 %v516, %v505
        %519 = vset.pattern.permute.xlu0 1
        %520 = vperm.xlu0 %519, %v262
        %v521 = vpop.permute.xlu0 %520
        %v523 = vmul.f32 %v521, %v506
        %v524 = vadd.f32 %v518, %v523
        %525 = vset.pattern.permute.xlu0 2
        %526 = vperm.xlu0 %525, %v262
        %v527 = vpop.permute.xlu0 %526
        %v529 = vmul.f32 %v527, %v507
        %v530 = vadd.f32 %v524, %v529
        %531 = vset.pattern.permute.xlu0 3
        %532 = vperm.xlu0 %531, %v262
        %v533 = vpop.permute.xlu0 %532
        %v535 = vmul.f32 %v533, %v508
        %v536 = vadd.f32 %v530, %v535
        %537 = vset.pattern.permute.xlu0 4
        %538 = vperm.xlu0 %537, %v262
        %v539 = vpop.permute.xlu0 %538
        %v541 = vmul.f32 %v539, %v509
        %v542 = vadd.f32 %v536, %v541
        %543 = vset.pattern.permute.xlu0 5
        %544 = vperm.xlu0 %543, %v262
        %v545 = vpop.permute.xlu0 %544
        %v547 = vmul.f32 %v545, %v510
        %v548 = vadd.f32 %v542, %v547
        %549 = vset.pattern.permute.xlu0 6
        %550 = vperm.xlu0 %549, %v262
        %v551 = vpop.permute.xlu0 %550
        %v553 = vmul.f32 %v551, %v511
        %v554 = vadd.f32 %v548, %v553
        %555 = vset.pattern.permute.xlu0 7
        %556 = vperm.xlu0 %555, %v262
        %v557 = vpop.permute.xlu0 %556
        %v559 = vmul.f32 %v557, %v512
        %v560 = vadd.f32 %v554, %v559
        %v561 = vmul.f32 %v560, 0.5
        %v562 = vtanh.pop %v561
        %v563 = vmul.f32 %v562, 0.5
        %v564 = vadd.f32 %v563, 0.5
        %v565 = vld [vmem:[%s217] sm:$0xff]
        %v566 = vmul.f32 %v565, %v564
        %567 = vadd.xlane.f32.xlu0 %v566
        %v568 = vpop.xlane.xlu0 %567
        %v570 = vlaneseq
        %v571 = vand.u32 %v570, 127
        %v572 = vlaneseq
        %v573 = vshrl.u32 %v572, 7
        %v574 = vsub.s32 %v571, %v573
        %v575 = vrot.slane %v568, %v574
        %vm577 = vcmask 57344
        %578 = vst.msk [vmem:[%s252] sm:$0x1] %vm577, %v575
        %s579 = sand.u32 %s129, 1
        %s580 = scalar_lea.sflag [#allocation4], %s579
        %s581 = sand.u32 %s129, 1
        %s582 = scalar_lea.vmem [#allocation7], %s581
        // Predicated region
        $region45: #{tpu_custom_call.1} parent=35 // pred_check
          %p583 = pneg %p139
        $region46: #{tpu_custom_call.1} parent=35 // pred_check_branch
          %585 = sbr.rel (%p583) target = $region48
        $region47: #{tpu_custom_call.1} parent=35 // pred_region
          %s587 = ssub.s32 16, 16
          %588 = vsyncadd %s580, %s587
          %s589 = smul.addr %s22, 16
          %s590 = scalar_lea.hbm %s4, %s589
          %s592 = sshll.u32 %s582, 4
          %s593 = int_to_ptr.vmem [resolvable:$true] %s592
          %595 = dma.vmem_to_hbm [thread:$0]  %s593, 16, %s590, %s580
        $region48: #{tpu_custom_call.1} parent=35 // pred_fallthru
          _
      $region36: #{tpu_custom_call.1} parent=5 // pred_fallthru
        _
      %p596 = scmp.le.s32.totalorder 2, %s17
      // Predicated region
      $region49: #{tpu_custom_call.1} parent=5 // pred_check
        %p597 = pneg %p596
      $region50: #{tpu_custom_call.1} parent=5 // pred_check_branch
        %599 = sbr.rel (%p597) target = $region52
      $region51: #{tpu_custom_call.1} parent=5 // pred_region
        %s600 = ssub.s32 %s17, 2
        // Predicated region
        $region53: #{tpu_custom_call.1} parent=51 // pred_check
          %p601 = pneg %p145
        $region54: #{tpu_custom_call.1} parent=51 // pred_check_branch
          %603 = sbr.rel (%p601) target = $region56
        $region55: #{tpu_custom_call.1} parent=51 // pred_region
          %s604 = sand.u32 %s130, 1
          %s605 = scalar_lea.sflag [#allocation4], %s604
          %s606 = sand.u32 %s130, 1
          %s607 = scalar_lea.vmem [#allocation7], %s606
          %608 = dma.done %s605, 16
        $region56: #{tpu_custom_call.1} parent=51 // pred_fallthru
          _
      $region52: #{tpu_custom_call.1} parent=5 // pred_fallthru
        _
    $region6: #{tpu_custom_call.1} parent=1 // loop_footer
      %s21 = sadd.s32 1, %s17
    $region7: #{tpu_custom_call.1} parent=1 // loop_footer_branch
      %16 = sbr.rel target = $region3
    $region8: #{tpu_custom_call.1} parent=1 // loop_exit
      _
    %609 = vsyncpa [#allocation3], 1
    %s610 = scalar_lea.sflag [#allocation3], 1
    %611 = vsyncpa %s610, 1
    %612 = vsyncpa [#allocation6], 1
    %613 = vsyncpa [#allocation4], 1
    %s614 = scalar_lea.sflag [#allocation4], 1
    %615 = vsyncpa %s614, 1

</llo_original>
